<compile_context>
chip_gen: v5e
topology: v5e:2x2
jax: 0.10.0
libtpu: 0.0.40
codegen_flags: <defaults>
</compile_context>

<pallas_src>
import jax
import jax.numpy as jnp
import numpy as np
from jax.experimental import pallas as pl
from jax.experimental.pallas import tpu as pltpu

EPS = 1e-5


def _basicblock_kernel(x_ref,            # (H, N*W*C)       input row slab (batch folded into lanes)
                       ba_ref, bb_ref,   # (3*N*W*C, N*W*C) kh-stacked banded conv_a / conv_b weights
                       proj_ref,         # (N*W*C, N*W*C)   per-channel projection, scaled by 1/(N*H*W)
                       ga_ref, bta_ref,  # (1, N*W*C)       bn_a gamma / beta broadcast to slab lanes
                       gb_ref, btb_ref,  # (1, N*W*C)       bn_b gamma / beta broadcast to slab lanes
                       out_ref):         # (H, N*W*C)       lane-dense output slab
    H, NWC = x_ref.shape
    x = x_ref[...]
    proj = proj_ref[...]
    rows = jax.lax.broadcasted_iota(jnp.int32, (H, 1), 0)

    def taps3(y):
        # (H, 3*NWC): the three kh-shifted views of y.  The H zero padding is realised by
        # masking the wrapped boundary row after a sublane rotation (XLU slot + VPU select),
        # so there is no padded VMEM scratch and no store->load round-trip.
        up = jnp.where(rows == 0, 0.0, pltpu.roll(y, shift=1, axis=0))          # rows h-1
        dn = jnp.where(rows == H - 1, 0.0, pltpu.roll(y, shift=H - 1, axis=0))  # rows h+1
        return jnp.concatenate([up, y, dn], axis=1)

    def conv3x3(y, band_ref):
        # One matmul per conv: kw taps + W zero padding live in the banded block-diagonal
        # weight, kh taps are fused along K (K = 3*N*W*C), N = N*W*C = 128 output lanes.
        return jnp.dot(taps3(y), band_ref[...], preferred_element_type=jnp.float32)

    def batchnorm(acc, gamma, beta):
        # Training-mode BN: biased batch statistics over (N, H, W) per channel.
        # Reduce over rows first (sublane sum), then the tiny projection matmul sums lanes
        # of the same channel, divides by N*H*W and broadcasts the stats back across the
        # (n, w, c) lane axis.  Two-pass, numerically stable form.
        mean = jnp.dot(jnp.sum(acc, axis=0, keepdims=True), proj,
                       preferred_element_type=jnp.float32)
        cent = acc - mean
        var = jnp.dot(jnp.sum(cent * cent, axis=0, keepdims=True), proj,
                      preferred_element_type=jnp.float32)
        return cent * (gamma * jax.lax.rsqrt(var + EPS)) + beta

    # ---------------- conv_a -> bn_a -> relu ----------------
    y_a = jnp.maximum(batchnorm(conv3x3(x, ba_ref), ga_ref[...], bta_ref[...]), 0.0)

    # -------- conv_b -> bn_b -> +residual -> relu (residual = x) --------
    y_b = batchnorm(conv3x3(y_a, bb_ref), gb_ref[...], btb_ref[...])
    out_ref[...] = jnp.maximum(y_b + x, 0.0)


def _banded_conv_weights(w, W, N):
    """w: (3, 3, Cin, Cout) -> (3*N*W*Cin, N*W*Cout) kh-stacked banded, block-diag-over-N weight.

    Within one batch block: B[kh][jx*Cin + ci, j*Cout + co] = w[kh, kw, ci, co] with
    kw = jx - j + 1 in {0,1,2}; entries needing out-of-range input columns are absent,
    which realises the zero padding along W.  The N batch blocks are independent, so the
    full matrix is block-diagonal over N.  (row_slab_taps @ band) then performs the whole
    kh/kw/ci contraction of the 3x3 conv as a single K = 3*N*W*Cin matmul.
    """
    _, _, Cin, Cout = w.shape
    J, KW, CI, CO = np.meshgrid(np.arange(W), np.arange(3), np.arange(Cin),
                                np.arange(Cout), indexing="ij")
    JX = J + KW - 1                                   # input column feeding output column J via tap KW
    keep = ((JX >= 0) & (JX < W)).reshape(-1)
    idx = np.where(keep)[0]
    rows = (JX * Cin + CI).reshape(-1)[idx]
    cols = (J * Cout + CO).reshape(-1)[idx]
    eye_n = jnp.eye(N, dtype=jnp.float32)
    mats = []
    for kh in range(3):
        vals = w[kh][KW, CI, CO].reshape(-1)[idx]
        band = jnp.zeros((W * Cin, W * Cout), jnp.float32).at[rows, cols].set(vals)
        mats.append(jnp.kron(eye_n, band))            # block-diagonal over the batch lanes
    return jnp.concatenate(mats, axis=0)              # (3*N*W*Cin, N*W*Cout)


def resnet_basicblock(x_nchw, params):
    """x_nchw: (N, Cin, H, W) float32, PyTorch layout. Returns (N, Cout, H, W)."""
    N, Cin, H, W = x_nchw.shape
    w_a = params["w_a"].astype(jnp.float32)           # (3, 3, Cin, Cout)
    w_b = params["w_b"].astype(jnp.float32)           # (3, 3, Cout, Cout)
    Cout = w_a.shape[-1]
    assert Cin == Cout, "downsample=None requires inplanes == planes"
    NWC = N * W * Cout

    # ---- layout glue (outside the kernel): NCHW -> (H, N, W, C) -> (H, N*W*C) row slab ----
    x_slab = jnp.transpose(x_nchw.astype(jnp.float32), (2, 0, 3, 1)).reshape(H, NWC)

    ba = _banded_conv_weights(w_a, W, N)               # (3*NWC, NWC)
    bb = _banded_conv_weights(w_b, W, N)               # (3*NWC, NWC)

    # Channel projection (sums lanes of the same channel, / (N*H*W)) and lane-broadcast affines.
    lane_c = np.arange(NWC) % Cout
    proj = jnp.asarray((lane_c[:, None] == lane_c[None, :]).astype(np.float32)
                       / float(N * H * W))

    def slab(v):                                       # (C,) -> (1, N*W*C) lane broadcast
        return jnp.tile(v.astype(jnp.float32), N * W).reshape(1, NWC)

    vmem = pl.BlockSpec(memory_space=pltpu.MemorySpace.VMEM)
    out_slab = pl.pallas_call(
        _basicblock_kernel,
        out_shape=jax.ShapeDtypeStruct((H, NWC), jnp.float32),
        in_specs=[vmem] * 8,
        out_specs=vmem,
    )(x_slab, ba, bb, proj,
      slab(params["gamma_a"]), slab(params["beta_a"]),
      slab(params["gamma_b"]), slab(params["beta_b"]))

    # (H, N*W*C) -> (H, N, W, C) -> NCHW
    return jnp.transpose(out_slab.reshape(H, N, W, Cout), (1, 3, 0, 2))


def _reference(x_nchw, params):
    """Pure-JAX reference of the PyTorch module (training-mode BN)."""
    def conv(x, w):
        return jax.lax.conv_general_dilated(
            x, w, window_strides=(1, 1), padding=((1, 1), (1, 1)),
            dimension_numbers=("NCHW", "HWIO", "NCHW"))

    def bn(x, g, b):
        mean = jnp.mean(x, axis=(0, 2, 3), keepdims=True)
        var = jnp.mean(jnp.square(x - mean), axis=(0, 2, 3), keepdims=True)
        xhat = (x - mean) * jax.lax.rsqrt(var + EPS)
        return xhat * g.reshape(1, -1, 1, 1) + b.reshape(1, -1, 1, 1)

    y = jnp.maximum(bn(conv(x_nchw, params["w_a"]), params["gamma_a"], params["beta_a"]), 0.0)
    y = bn(conv(y, params["w_b"]), params["gamma_b"], params["beta_b"])
    return jnp.maximum(y + x_nchw, 0.0)


if __name__ == "__main__":
    # Small shapes consistent with the module: batch=2, inplanes=planes=4, 16x16 spatial.
    N, C, H, W = 2, 4, 16, 16
    key = jax.random.PRNGKey(0)
    kx, kwa, kwb, kg1, kb1, kg2, kb2 = jax.random.split(key, 7)

    x = jax.random.normal(kx, (N, C, H, W), dtype=jnp.float32)

    fan_in = C * 3 * 3
    params = {
        "w_a": jax.random.normal(kwa, (3, 3, C, C), jnp.float32) * (2.0 / fan_in) ** 0.5,
        "w_b": jax.random.normal(kwb, (3, 3, C, C), jnp.float32) * (2.0 / fan_in) ** 0.5,
        "gamma_a": 1.0 + 0.1 * jax.random.normal(kg1, (C,), jnp.float32),
        "beta_a": 0.1 * jax.random.normal(kb1, (C,), jnp.float32),
        "gamma_b": 1.0 + 0.1 * jax.random.normal(kg2, (C,), jnp.float32),
        "beta_b": 0.1 * jax.random.normal(kb2, (C,), jnp.float32),
    }

    out = jax.jit(resnet_basicblock)(x, params)
    jax.block_until_ready(out)
    assert out.shape == (N, C, H, W)

    ref = _reference(x, params)
    np.testing.assert_allclose(np.asarray(out), np.asarray(ref), rtol=2e-3, atol=2e-3)
    print("KERNEL_OK")
</pallas_src>

<mosaic_0001>
module attributes {stable_mosaic.version = 11 : i64} {
  func.func @_basicblock_kernel(%arg0: memref<16x128xf32, #tpu.memory_space<vmem>>, %arg1: memref<384x128xf32, #tpu.memory_space<vmem>>, %arg2: memref<384x128xf32, #tpu.memory_space<vmem>>, %arg3: memref<128x128xf32, #tpu.memory_space<vmem>>, %arg4: memref<1x128xf32, #tpu.memory_space<vmem>>, %arg5: memref<1x128xf32, #tpu.memory_space<vmem>>, %arg6: memref<1x128xf32, #tpu.memory_space<vmem>>, %arg7: memref<1x128xf32, #tpu.memory_space<vmem>>, %arg8: memref<16x128xf32, #tpu.memory_space<vmem>>) attributes {dimension_semantics = [], scalar_prefetch = 0 : i64, scratch_operands = 0 : i64, tpu.core_type = #tpu.core_type<tc>} {
    %c0 = arith.constant 0 : index
    %c0_0 = arith.constant 0 : index
    %0 = vector.load %arg0[%c0, %c0_0] : memref<16x128xf32, #tpu.memory_space<vmem>>, vector<16x128xf32>
    %c0_1 = arith.constant 0 : index
    %c0_2 = arith.constant 0 : index
    %1 = vector.load %arg3[%c0_1, %c0_2] : memref<128x128xf32, #tpu.memory_space<vmem>>, vector<128x128xf32>
    %2 = tpu.iota {dimensions = array<i32: 0>} : vector<16x1xi32>
    %c0_i32 = arith.constant 0 : i32
    %3 = vector.broadcast %c0_i32 : i32 to vector<16x1xi32>
    %4 = arith.cmpi eq, %2, %3 : vector<16x1xi32>
    %c1_i32 = arith.constant 1 : i32
    %5 = tpu.dynamic_rotate %0 by %c1_i32 dim 0 : vector<16x128xf32>, i32 -> vector<16x128xf32>
    %cst = arith.constant 0.000000e+00 : f32
    %6 = vector.shape_cast %4 : vector<16x1xi1> to vector<16x1xi1>
    %7 = vector.broadcast %6 : vector<16x1xi1> to vector<16x128xi1>
    %8 = vector.broadcast %cst : f32 to vector<16x128xf32>
    %9 = arith.select %7, %8, %5 : vector<16x128xi1>, vector<16x128xf32>
    %c15_i32 = arith.constant 15 : i32
    %10 = vector.broadcast %c15_i32 : i32 to vector<16x1xi32>
    %11 = arith.cmpi eq, %2, %10 : vector<16x1xi32>
    %c15_i32_3 = arith.constant 15 : i32
    %12 = tpu.dynamic_rotate %0 by %c15_i32_3 dim 0 : vector<16x128xf32>, i32 -> vector<16x128xf32>
    %cst_4 = arith.constant 0.000000e+00 : f32
    %13 = vector.shape_cast %11 : vector<16x1xi1> to vector<16x1xi1>
    %14 = vector.broadcast %13 : vector<16x1xi1> to vector<16x128xi1>
    %15 = vector.broadcast %cst_4 : f32 to vector<16x128xf32>
    %16 = arith.select %14, %15, %12 : vector<16x128xi1>, vector<16x128xf32>
    %17 = tpu.concatenate %9, %0, %16 in 1 : vector<16x128xf32>, vector<16x128xf32>, vector<16x128xf32> -> vector<16x384xf32>
    %c0_5 = arith.constant 0 : index
    %c0_6 = arith.constant 0 : index
    %18 = vector.load %arg1[%c0_5, %c0_6] : memref<384x128xf32, #tpu.memory_space<vmem>>, vector<384x128xf32>
    %cst_7 = arith.constant dense<0.000000e+00> : vector<16x128xf32>
    %19 = tpu.matmul %17, %18, %cst_7 {dimension_numbers = #tpu.dot_dimension_numbers<[1], [0], [0], [1], [0, 0, 1, 1], [], []>} : vector<16x384xf32>, vector<384x128xf32>, vector<16x128xf32> -> vector<16x128xf32>
    %c0_8 = arith.constant 0 : index
    %c0_9 = arith.constant 0 : index
    %20 = vector.load %arg4[%c0_8, %c0_9] : memref<1x128xf32, #tpu.memory_space<vmem>>, vector<1x128xf32>
    %c0_10 = arith.constant 0 : index
    %c0_11 = arith.constant 0 : index
    %21 = vector.load %arg5[%c0_10, %c0_11] : memref<1x128xf32, #tpu.memory_space<vmem>>, vector<1x128xf32>
    %cst_12 = arith.constant dense<0.000000e+00> : vector<128xf32>
    %22 = vector.multi_reduction <add>, %19, %cst_12 [0] : vector<16x128xf32> to vector<128xf32>
    %23 = vector.shape_cast %22 : vector<128xf32> to vector<1x128xf32>
    %cst_13 = arith.constant dense<0.000000e+00> : vector<1x128xf32>
    %24 = tpu.matmul %23, %1, %cst_13 {dimension_numbers = #tpu.dot_dimension_numbers<[1], [0], [0], [1], [0, 0, 1, 1], [], []>} : vector<1x128xf32>, vector<128x128xf32>, vector<1x128xf32> -> vector<1x128xf32>
    %25 = vector.broadcast %24 : vector<1x128xf32> to vector<16x128xf32>
    %26 = arith.subf %19, %25 : vector<16x128xf32>
    %27 = arith.mulf %26, %26 : vector<16x128xf32>
    %cst_14 = arith.constant dense<0.000000e+00> : vector<128xf32>
    %28 = vector.multi_reduction <add>, %27, %cst_14 [0] : vector<16x128xf32> to vector<128xf32>
    %29 = vector.shape_cast %28 : vector<128xf32> to vector<1x128xf32>
    %cst_15 = arith.constant dense<0.000000e+00> : vector<1x128xf32>
    %30 = tpu.matmul %29, %1, %cst_15 {dimension_numbers = #tpu.dot_dimension_numbers<[1], [0], [0], [1], [0, 0, 1, 1], [], []>} : vector<1x128xf32>, vector<128x128xf32>, vector<1x128xf32> -> vector<1x128xf32>
    %cst_16 = arith.constant 9.99999974E-6 : f32
    %31 = vector.broadcast %cst_16 : f32 to vector<1x128xf32>
    %32 = arith.addf %30, %31 : vector<1x128xf32>
    %33 = math.rsqrt %32 : vector<1x128xf32>
    %34 = arith.mulf %20, %33 : vector<1x128xf32>
    %35 = vector.broadcast %34 : vector<1x128xf32> to vector<16x128xf32>
    %36 = arith.mulf %26, %35 : vector<16x128xf32>
    %37 = vector.broadcast %21 : vector<1x128xf32> to vector<16x128xf32>
    %38 = arith.addf %36, %37 : vector<16x128xf32>
    %cst_17 = arith.constant 0.000000e+00 : f32
    %39 = vector.broadcast %cst_17 : f32 to vector<16x128xf32>
    %40 = arith.maximumf %38, %39 : vector<16x128xf32>
    %c0_i32_18 = arith.constant 0 : i32
    %41 = vector.broadcast %c0_i32_18 : i32 to vector<16x1xi32>
    %42 = arith.cmpi eq, %2, %41 : vector<16x1xi32>
    %c1_i32_19 = arith.constant 1 : i32
    %43 = tpu.dynamic_rotate %40 by %c1_i32_19 dim 0 : vector<16x128xf32>, i32 -> vector<16x128xf32>
    %cst_20 = arith.constant 0.000000e+00 : f32
    %44 = vector.shape_cast %42 : vector<16x1xi1> to vector<16x1xi1>
    %45 = vector.broadcast %44 : vector<16x1xi1> to vector<16x128xi1>
    %46 = vector.broadcast %cst_20 : f32 to vector<16x128xf32>
    %47 = arith.select %45, %46, %43 : vector<16x128xi1>, vector<16x128xf32>
    %c15_i32_21 = arith.constant 15 : i32
    %48 = vector.broadcast %c15_i32_21 : i32 to vector<16x1xi32>
    %49 = arith.cmpi eq, %2, %48 : vector<16x1xi32>
    %c15_i32_22 = arith.constant 15 : i32
    %50 = tpu.dynamic_rotate %40 by %c15_i32_22 dim 0 : vector<16x128xf32>, i32 -> vector<16x128xf32>
    %cst_23 = arith.constant 0.000000e+00 : f32
    %51 = vector.shape_cast %49 : vector<16x1xi1> to vector<16x1xi1>
    %52 = vector.broadcast %51 : vector<16x1xi1> to vector<16x128xi1>
    %53 = vector.broadcast %cst_23 : f32 to vector<16x128xf32>
    %54 = arith.select %52, %53, %50 : vector<16x128xi1>, vector<16x128xf32>
    %55 = tpu.concatenate %47, %40, %54 in 1 : vector<16x128xf32>, vector<16x128xf32>, vector<16x128xf32> -> vector<16x384xf32>
    %c0_24 = arith.constant 0 : index
    %c0_25 = arith.constant 0 : index
    %56 = vector.load %arg2[%c0_24, %c0_25] : memref<384x128xf32, #tpu.memory_space<vmem>>, vector<384x128xf32>
    %cst_26 = arith.constant dense<0.000000e+00> : vector<16x128xf32>
    %57 = tpu.matmul %55, %56, %cst_26 {dimension_numbers = #tpu.dot_dimension_numbers<[1], [0], [0], [1], [0, 0, 1, 1], [], []>} : vector<16x384xf32>, vector<384x128xf32>, vector<16x128xf32> -> vector<16x128xf32>
    %c0_27 = arith.constant 0 : index
    %c0_28 = arith.constant 0 : index
    %58 = vector.load %arg6[%c0_27, %c0_28] : memref<1x128xf32, #tpu.memory_space<vmem>>, vector<1x128xf32>
    %c0_29 = arith.constant 0 : index
    %c0_30 = arith.constant 0 : index
    %59 = vector.load %arg7[%c0_29, %c0_30] : memref<1x128xf32, #tpu.memory_space<vmem>>, vector<1x128xf32>
    %cst_31 = arith.constant dense<0.000000e+00> : vector<128xf32>
    %60 = vector.multi_reduction <add>, %57, %cst_31 [0] : vector<16x128xf32> to vector<128xf32>
    %61 = vector.shape_cast %60 : vector<128xf32> to vector<1x128xf32>
    %cst_32 = arith.constant dense<0.000000e+00> : vector<1x128xf32>
    %62 = tpu.matmul %61, %1, %cst_32 {dimension_numbers = #tpu.dot_dimension_numbers<[1], [0], [0], [1], [0, 0, 1, 1], [], []>} : vector<1x128xf32>, vector<128x128xf32>, vector<1x128xf32> -> vector<1x128xf32>
    %63 = vector.broadcast %62 : vector<1x128xf32> to vector<16x128xf32>
    %64 = arith.subf %57, %63 : vector<16x128xf32>
    %65 = arith.mulf %64, %64 : vector<16x128xf32>
    %cst_33 = arith.constant dense<0.000000e+00> : vector<128xf32>
    %66 = vector.multi_reduction <add>, %65, %cst_33 [0] : vector<16x128xf32> to vector<128xf32>
    %67 = vector.shape_cast %66 : vector<128xf32> to vector<1x128xf32>
    %cst_34 = arith.constant dense<0.000000e+00> : vector<1x128xf32>
    %68 = tpu.matmul %67, %1, %cst_34 {dimension_numbers = #tpu.dot_dimension_numbers<[1], [0], [0], [1], [0, 0, 1, 1], [], []>} : vector<1x128xf32>, vector<128x128xf32>, vector<1x128xf32> -> vector<1x128xf32>
    %cst_35 = arith.constant 9.99999974E-6 : f32
    %69 = vector.broadcast %cst_35 : f32 to vector<1x128xf32>
    %70 = arith.addf %68, %69 : vector<1x128xf32>
    %71 = math.rsqrt %70 : vector<1x128xf32>
    %72 = arith.mulf %58, %71 : vector<1x128xf32>
    %73 = vector.broadcast %72 : vector<1x128xf32> to vector<16x128xf32>
    %74 = arith.mulf %64, %73 : vector<16x128xf32>
    %75 = vector.broadcast %59 : vector<1x128xf32> to vector<16x128xf32>
    %76 = arith.addf %74, %75 : vector<16x128xf32>
    %77 = arith.addf %76, %0 : vector<16x128xf32>
    %cst_36 = arith.constant 0.000000e+00 : f32
    %78 = vector.broadcast %cst_36 : f32 to vector<16x128xf32>
    %79 = arith.maximumf %77, %78 : vector<16x128xf32>
    %c0_37 = arith.constant 0 : index
    %c0_38 = arith.constant 0 : index
    %80 = vector.load %arg8[%c0_37, %c0_38] : memref<16x128xf32, #tpu.memory_space<vmem>>, vector<16x128xf32>
    tpu.vector_store %arg8[%c0_37, %c0_38], %79 {strides = array<i32>} : memref<16x128xf32, #tpu.memory_space<vmem>>, vector<16x128xf32>,
    return
  }
}

</mosaic_0001>

<llo_original>
// kernel: tile.23
$region0: #{tile.23}
  #allocation0 [shape = 's32[1]{0}', space=sflag, size = 0x4, scoped, tag = 'scoped memory for tile.23']
  %s0 = inlined_call_operand.vmem [shape: f32[4], index: 0, kind: input, shape index: {}]
  %s1 = inlined_call_operand.vmem [shape: f32[32,4], index: 1, kind: output, shape index: {}]
  // Predicated region
  $region2: #{tile.23} parent=0 // pred_check
    _
  $region3: #{tile.23} parent=0 // pred_check_branch
    %3 = sbr.rel (0) target = $region5
  $region4: #{tile.23} parent=0 // pred_region
    _
  $region5: #{tile.23} parent=0 // pred_fallthru
    _
  %v4 = vld [vmem:[%s0] ss:$0 sm:$0xff]
  %5 = vst [vmem:[%s1] sm:$0xff] %v4
  %s6 = scalar_lea.vmem %s1, 8
  %7 = vst [vmem:[%s6] sm:$0xff] %v4
  %s8 = scalar_lea.vmem %s1, 16
  %9 = vst [vmem:[%s8] sm:$0xff] %v4
  %s10 = scalar_lea.vmem %s1, 24
  %11 = vst [vmem:[%s10] sm:$0xff] %v4

// kernel: tile.24
$region0: #{tile.24}
  %s0 = inlined_call_operand.vmem [shape: f32[32,4], index: 0, kind: input, shape index: {}]
  %s1 = inlined_call_operand.vmem [shape: f32[1,128], index: 1, kind: output, shape index: {}]
  $region1: #{tile.24} parent=0
    #allocation0 [shape = 'u8[4096]{0}', space=vmem, size = 0x1000, scoped, tag = 'scoped mem for output reshape']
    %v2 = vld [vmem:[%s0] sm:$0x1]
    %vm3 = vcmask 31744
    %4 = vst.msk [vmem:[#allocation0] sm:$0x1] %vm3, %v2
    %s5 = scalar_lea.vmem %s0, 31
    %v6 = vld [vmem:[%s5] sm:$0x1]
    %7 = vrot.lane.b32.xlu0 %v6, 124
    %v8 = vpop.permute.xlu0 %7
    %vm9 = vcmask 1048544
    %10 = vst.msk [vmem:[#allocation0] sm:$0x1] %vm9, %v8
    %s11 = scalar_lea.vmem %s0, 30
    %v12 = vld [vmem:[%s11] sm:$0x1]
    %13 = vrot.lane.b32.xlu0 %v12, 120
    %v14 = vpop.permute.xlu0 %13
    %vm15 = vcmask 1015744
    %16 = vst.msk [vmem:[#allocation0] sm:$0x1] %vm15, %v14
    %s17 = scalar_lea.vmem %s0, 29
    %v18 = vld [vmem:[%s17] sm:$0x1]
    %19 = vrot.lane.b32.xlu0 %v18, 116
    %v20 = vpop.permute.xlu0 %19
    %vm21 = vcmask 982944
    %22 = vst.msk [vmem:[#allocation0] sm:$0x1] %vm21, %v20
    %s23 = scalar_lea.vmem %s0, 28
    %v24 = vld [vmem:[%s23] sm:$0x1]
    %25 = vrot.lane.b32.xlu0 %v24, 112
    %v26 = vpop.permute.xlu0 %25
    %vm27 = vcmask 950144
    %28 = vst.msk [vmem:[#allocation0] sm:$0x1] %vm27, %v26
    %s29 = scalar_lea.vmem %s0, 27
    %v30 = vld [vmem:[%s29] sm:$0x1]
    %31 = vrot.lane.b32.xlu0 %v30, 108
    %v32 = vpop.permute.xlu0 %31
    %vm33 = vcmask 917344
    %34 = vst.msk [vmem:[#allocation0] sm:$0x1] %vm33, %v32
    %s35 = scalar_lea.vmem %s0, 26
    %v36 = vld [vmem:[%s35] sm:$0x1]
    %37 = vrot.lane.b32.xlu0 %v36, 104
    %v38 = vpop.permute.xlu0 %37
    %vm39 = vcmask 884544
    %40 = vst.msk [vmem:[#allocation0] sm:$0x1] %vm39, %v38
    %s41 = scalar_lea.vmem %s0, 25
    %v42 = vld [vmem:[%s41] sm:$0x1]
    %43 = vrot.lane.b32.xlu0 %v42, 100
    %v44 = vpop.permute.xlu0 %43
    %vm45 = vcmask 851744
    %46 = vst.msk [vmem:[#allocation0] sm:$0x1] %vm45, %v44
    %s47 = scalar_lea.vmem %s0, 24
    %v48 = vld [vmem:[%s47] sm:$0x1]
    %49 = vrot.lane.b32.xlu0 %v48, 96
    %v50 = vpop.permute.xlu0 %49
    %vm51 = vcmask 818944
    %52 = vst.msk [vmem:[#allocation0] sm:$0x1] %vm51, %v50
    %s53 = scalar_lea.vmem %s0, 23
    %v54 = vld [vmem:[%s53] sm:$0x1]
    %55 = vrot.lane.b32.xlu0 %v54, 92
    %v56 = vpop.permute.xlu0 %55
    %vm57 = vcmask 786144
    %58 = vst.msk [vmem:[#allocation0] sm:$0x1] %vm57, %v56
    %s59 = scalar_lea.vmem %s0, 22
    %v60 = vld [vmem:[%s59] sm:$0x1]
    %61 = vrot.lane.b32.xlu0 %v60, 88
    %v62 = vpop.permute.xlu0 %61
    %vm63 = vcmask 753344
    %64 = vst.msk [vmem:[#allocation0] sm:$0x1] %vm63, %v62
    %s65 = scalar_lea.vmem %s0, 21
    %v66 = vld [vmem:[%s65] sm:$0x1]
    %67 = vrot.lane.b32.xlu0 %v66, 84
    %v68 = vpop.permute.xlu0 %67
    %vm69 = vcmask 720544
    %70 = vst.msk [vmem:[#allocation0] sm:$0x1] %vm69, %v68
    %s71 = scalar_lea.vmem %s0, 20
    %v72 = vld [vmem:[%s71] sm:$0x1]
    %73 = vrot.lane.b32.xlu0 %v72, 80
    %v74 = vpop.permute.xlu0 %73
    %vm75 = vcmask 687744
    %76 = vst.msk [vmem:[#allocation0] sm:$0x1] %vm75, %v74
    %s77 = scalar_lea.vmem %s0, 19
    %v78 = vld [vmem:[%s77] sm:$0x1]
    %79 = vrot.lane.b32.xlu0 %v78, 76
    %v80 = vpop.permute.xlu0 %79
    %vm81 = vcmask 654944
    %82 = vst.msk [vmem:[#allocation0] sm:$0x1] %vm81, %v80
    %s83 = scalar_lea.vmem %s0, 18
    %v84 = vld [vmem:[%s83] sm:$0x1]
    %85 = vrot.lane.b32.xlu0 %v84, 72
    %v86 = vpop.permute.xlu0 %85
    %vm87 = vcmask 622144
    %88 = vst.msk [vmem:[#allocation0] sm:$0x1] %vm87, %v86
    %s89 = scalar_lea.vmem %s0, 17
    %v90 = vld [vmem:[%s89] sm:$0x1]
    %91 = vrot.lane.b32.xlu0 %v90, 68
    %v92 = vpop.permute.xlu0 %91
    %vm93 = vcmask 589344
    %94 = vst.msk [vmem:[#allocation0] sm:$0x1] %vm93, %v92
    %s95 = scalar_lea.vmem %s0, 16
    %v96 = vld [vmem:[%s95] sm:$0x1]
    %97 = vrot.lane.b32.xlu0 %v96, 64
    %v98 = vpop.permute.xlu0 %97
    %vm99 = vcmask 556544
    %100 = vst.msk [vmem:[#allocation0] sm:$0x1] %vm99, %v98
    %s101 = scalar_lea.vmem %s0, 15
    %v102 = vld [vmem:[%s101] sm:$0x1]
    %103 = vrot.lane.b32.xlu0 %v102, 60
    %v104 = vpop.permute.xlu0 %103
    %vm105 = vcmask 523744
    %106 = vst.msk [vmem:[#allocation0] sm:$0x1] %vm105, %v104
    %s107 = scalar_lea.vmem %s0, 14
    %v108 = vld [vmem:[%s107] sm:$0x1]
    %109 = vrot.lane.b32.xlu0 %v108, 56
    %v110 = vpop.permute.xlu0 %109
    %vm111 = vcmask 490944
    %112 = vst.msk [vmem:[#allocation0] sm:$0x1] %vm111, %v110
    %s113 = scalar_lea.vmem %s0, 13
    %v114 = vld [vmem:[%s113] sm:$0x1]
    %115 = vrot.lane.b32.xlu0 %v114, 52
    %v116 = vpop.permute.xlu0 %115
    %vm117 = vcmask 458144
    %118 = vst.msk [vmem:[#allocation0] sm:$0x1] %vm117, %v116
    %s119 = scalar_lea.vmem %s0, 12
    %v120 = vld [vmem:[%s119] sm:$0x1]
    %121 = vrot.lane.b32.xlu0 %v120, 48
    %v122 = vpop.permute.xlu0 %121
    %vm123 = vcmask 425344
    %124 = vst.msk [vmem:[#allocation0] sm:$0x1] %vm123, %v122
    %s125 = scalar_lea.vmem %s0, 11
    %v126 = vld [vmem:[%s125] sm:$0x1]
    %127 = vrot.lane.b32.xlu0 %v126, 44
    %v128 = vpop.permute.xlu0 %127
    %vm129 = vcmask 392544
    %130 = vst.msk [vmem:[#allocation0] sm:$0x1] %vm129, %v128
    %s131 = scalar_lea.vmem %s0, 10
    %v132 = vld [vmem:[%s131] sm:$0x1]
    %133 = vrot.lane.b32.xlu0 %v132, 40
    %v134 = vpop.permute.xlu0 %133
    %vm135 = vcmask 359744
    %136 = vst.msk [vmem:[#allocation0] sm:$0x1] %vm135, %v134
    %s137 = scalar_lea.vmem %s0, 9
    %v138 = vld [vmem:[%s137] sm:$0x1]
    %139 = vrot.lane.b32.xlu0 %v138, 36
    %v140 = vpop.permute.xlu0 %139
    %vm141 = vcmask 326944
    %142 = vst.msk [vmem:[#allocation0] sm:$0x1] %vm141, %v140
    %s143 = scalar_lea.vmem %s0, 8
    %v144 = vld [vmem:[%s143] sm:$0x1]
    %145 = vrot.lane.b32.xlu0 %v144, 32
    %v146 = vpop.permute.xlu0 %145
    %vm147 = vcmask 294144
    %148 = vst.msk [vmem:[#allocation0] sm:$0x1] %vm147, %v146
    %s149 = scalar_lea.vmem %s0, 7
    %v150 = vld [vmem:[%s149] sm:$0x1]
    %151 = vrot.lane.b32.xlu0 %v150, 28
    %v152 = vpop.permute.xlu0 %151
    %vm153 = vcmask 261344
    %154 = vst.msk [vmem:[#allocation0] sm:$0x1] %vm153, %v152
    %s155 = scalar_lea.vmem %s0, 6
    %v156 = vld [vmem:[%s155] sm:$0x1]
    %157 = vrot.lane.b32.xlu0 %v156, 24
    %v158 = vpop.permute.xlu0 %157
    %vm159 = vcmask 228544
    %160 = vst.msk [vmem:[#allocation0] sm:$0x1] %vm159, %v158
    %s161 = scalar_lea.vmem %s0, 5
    %v162 = vld [vmem:[%s161] sm:$0x1]
    %163 = vrot.lane.b32.xlu0 %v162, 20
    %v164 = vpop.permute.xlu0 %163
    %vm165 = vcmask 195744
    %166 = vst.msk [vmem:[#allocation0] sm:$0x1] %vm165, %v164
    %s167 = scalar_lea.vmem %s0, 4
    %v168 = vld [vmem:[%s167] sm:$0x1]
    %169 = vrot.lane.b32.xlu0 %v168, 16
    %v170 = vpop.permute.xlu0 %169
    %vm171 = vcmask 162944
    %172 = vst.msk [vmem:[#allocation0] sm:$0x1] %vm171, %v170
    %s173 = scalar_lea.vmem %s0, 3
    %v174 = vld [vmem:[%s173] sm:$0x1]
    %175 = vrot.lane.b32.xlu0 %v174, 12
    %v176 = vpop.permute.xlu0 %175
    %vm177 = vcmask 130144
    %178 = vst.msk [vmem:[#allocation0] sm:$0x1] %vm177, %v176
    %s179 = scalar_lea.vmem %s0, 2
    %v180 = vld [vmem:[%s179] sm:$0x1]
    %181 = vrot.lane.b32.xlu0 %v180, 8
    %v182 = vpop.permute.xlu0 %181
    %vm183 = vcmask 97344
    %184 = vst.msk [vmem:[#allocation0] sm:$0x1] %vm183, %v182
    %s185 = scalar_lea.vmem %s0, 1
    %v186 = vld [vmem:[%s185] sm:$0x1]
    %187 = vrot.lane.b32.xlu0 %v186, 4
    %v188 = vpop.permute.xlu0 %187
    %vm189 = vcmask 64544
    %190 = vst.msk [vmem:[#allocation0] sm:$0x1] %vm189, %v188
    %s192 = ssub.s32 2, 1
    %v193 = vld [vmem:[#allocation0] sm:%s192]
    %s195 = ssub.s32 2, 1
    %196 = vst [vmem:[%s1] sm:%s195] %v193

// kernel: resnet_basicblock.1
$region0: #{resnet_basicblock.1}
  #allocation0 [shape = 'u32[]', space=smem, size = 0x4, offset = 0x4, fixed_abs, tag = 'smem constant byte address 0x4 - core index']
  #allocation1 [shape = 'u32[72,128]{1,0:T(1,128)}', space=vmem, size = 0x9000, scoped, tag = 'internal scratch']
  %s0 = inlined_call_operand.vmem [shape: f32[16,128], index: 0, kind: input, shape index: {}]
  %s1 = inlined_call_operand.vmem [shape: f32[384,128], index: 1, kind: input, shape index: {}]
  %s2 = inlined_call_operand.vmem [shape: f32[384,128], index: 2, kind: input, shape index: {}]
  %s3 = inlined_call_operand.vmem [shape: f32[128,128], index: 3, kind: input, shape index: {}]
  %s4 = inlined_call_operand.vmem [shape: f32[1,128], index: 4, kind: input, shape index: {}]
  %s5 = inlined_call_operand.vmem [shape: f32[1,128], index: 5, kind: input, shape index: {}]
  %s6 = inlined_call_operand.vmem [shape: f32[1,128], index: 6, kind: input, shape index: {}]
  %s7 = inlined_call_operand.vmem [shape: f32[1,128], index: 7, kind: input, shape index: {}]
  %s8 = inlined_call_operand.vmem [shape: f32[16,128], index: 8, kind: output, shape index: {}]
  %s9 = sld [smem:[#allocation0]]
  $region42: #{resnet_basicblock.1} parent=0
    _
  %s11 = ssub.s32 1, %s9
  %s12 = scalar_select 0, %s11, %s9
  // Predicated region
  $region2: #{resnet_basicblock.1} parent=0 // pred_check
    _
  $region3: #{resnet_basicblock.1} parent=0 // pred_check_branch
    %14 = sbr.rel (0) target = $region5
  $region4: #{resnet_basicblock.1} parent=0 // pred_region
    _
  $region5: #{resnet_basicblock.1} parent=0 // pred_fallthru
    _
  // Predicated region
  $region6: #{resnet_basicblock.1} parent=0 // pred_check
    _
  $region7: #{resnet_basicblock.1} parent=0 // pred_check_branch
    %16 = sbr.rel (0) target = $region9
  $region8: #{resnet_basicblock.1} parent=0 // pred_region
    _
  $region9: #{resnet_basicblock.1} parent=0 // pred_fallthru
    _
  // Predicated region
  $region10: #{resnet_basicblock.1} parent=0 // pred_check
    _
  $region11: #{resnet_basicblock.1} parent=0 // pred_check_branch
    %18 = sbr.rel (0) target = $region13
  $region12: #{resnet_basicblock.1} parent=0 // pred_region
    _
  $region13: #{resnet_basicblock.1} parent=0 // pred_fallthru
    _
  // Predicated region
  $region14: #{resnet_basicblock.1} parent=0 // pred_check
    _
  $region15: #{resnet_basicblock.1} parent=0 // pred_check_branch
    %20 = sbr.rel (0) target = $region17
  $region16: #{resnet_basicblock.1} parent=0 // pred_region
    _
  $region17: #{resnet_basicblock.1} parent=0 // pred_fallthru
    _
  // Predicated region
  $region18: #{resnet_basicblock.1} parent=0 // pred_check
    _
  $region19: #{resnet_basicblock.1} parent=0 // pred_check_branch
    %22 = sbr.rel (0) target = $region21
  $region20: #{resnet_basicblock.1} parent=0 // pred_region
    _
  $region21: #{resnet_basicblock.1} parent=0 // pred_fallthru
    _
  // Predicated region
  $region22: #{resnet_basicblock.1} parent=0 // pred_check
    _
  $region23: #{resnet_basicblock.1} parent=0 // pred_check_branch
    %24 = sbr.rel (0) target = $region25
  $region24: #{resnet_basicblock.1} parent=0 // pred_region
    _
  $region25: #{resnet_basicblock.1} parent=0 // pred_fallthru
    _
  // Predicated region
  $region26: #{resnet_basicblock.1} parent=0 // pred_check
    _
  $region27: #{resnet_basicblock.1} parent=0 // pred_check_branch
    %26 = sbr.rel (0) target = $region29
  $region28: #{resnet_basicblock.1} parent=0 // pred_region
    _
  $region29: #{resnet_basicblock.1} parent=0 // pred_fallthru
    _
  // Predicated region
  $region30: #{resnet_basicblock.1} parent=0 // pred_check
    _
  $region31: #{resnet_basicblock.1} parent=0 // pred_check_branch
    %28 = sbr.rel (0) target = $region33
  $region32: #{resnet_basicblock.1} parent=0 // pred_region
    _
  $region33: #{resnet_basicblock.1} parent=0 // pred_fallthru
    _
  %v29 = vld [vmem:[%s0] sm:$0xff]
  %v30 = vld [vmem:[%s0 + $0x8] sm:$0xff]
  %v31 = vld [vmem:[%s3] sm:$0xff]
  %v32 = vld [vmem:[%s3 + $0x8] sm:$0xff]
  %v33 = vld [vmem:[%s3 + $0x10] sm:$0xff]
  %v34 = vld [vmem:[%s3 + $0x18] sm:$0xff]
  %v35 = vld [vmem:[%s3 + $0x20] sm:$0xff]
  %v36 = vld [vmem:[%s3 + $0x28] sm:$0xff]
  %v37 = vld [vmem:[%s3 + $0x30] sm:$0xff]
  %v38 = vld [vmem:[%s3 + $0x38] sm:$0xff]
  %v39 = vld [vmem:[%s3 + $0x40] sm:$0xff]
  %v40 = vld [vmem:[%s3 + $0x48] sm:$0xff]
  %v41 = vld [vmem:[%s3 + $0x50] sm:$0xff]
  %v42 = vld [vmem:[%s3 + $0x58] sm:$0xff]
  %v43 = vld [vmem:[%s3 + $0x60] sm:$0xff]
  %v44 = vld [vmem:[%s3 + $0x68] sm:$0xff]
  %v45 = vld [vmem:[%s3 + $0x70] sm:$0xff]
  %v46 = vld [vmem:[%s3 + $0x78] sm:$0xff]
  %v47 = vlaneseq
  %v48 = vshrl.u32 %v47, 7
  %v49 = vadd.s32 %v48, 8
  %vm50 = vcmp.eq.s32.totalorder %v48, 0
  %vm51 = vcmp.eq.s32.totalorder %v49, 0
  %v52 = vrot.slane %v29, 7
  %v53 = vrot.slane %v30, 7
  %vm54 = vcmp.lt.s32.totalorder %v48, 1
  %v55 = vsel %vm54, %v52, %v53
  %v56 = vsel %vm54, %v53, %v52
  %v57 = vsel %vm50, 1, 0
  %v58 = vsel %vm51, 1, 0
  %vm59 = vcmp.eq.s32.totalorder %v57, 1
  %vm60 = vcmp.eq.s32.totalorder %v58, 1
  %v61 = vsel %vm59, 0.0, %v56
  %v62 = vsel %vm60, 0.0, %v55
  %vm63 = vcmp.eq.s32.totalorder %v48, 15
  %vm64 = vcmp.eq.s32.totalorder %v49, 15
  %v65 = vrot.slane %v29, 1
  %v66 = vrot.slane %v30, 1
  %vm67 = vcmp.lt.s32.totalorder %v48, 7
  %v68 = vsel %vm67, %v65, %v66
  %v69 = vsel %vm67, %v66, %v65
  %v70 = vsel %vm63, 1, 0
  %v71 = vsel %vm64, 1, 0
  %vm72 = vcmp.eq.s32.totalorder %v70, 1
  %vm73 = vcmp.eq.s32.totalorder %v71, 1
  %v74 = vsel %vm72, 0.0, %v68
  %v75 = vsel %vm73, 0.0, %v69
  %v76 = vld [vmem:[%s1] sm:$0xff]
  %v77 = vld [vmem:[%s1 + $0x8] sm:$0xff]
  %v78 = vld [vmem:[%s1 + $0x10] sm:$0xff]
  %v79 = vld [vmem:[%s1 + $0x18] sm:$0xff]
  %v80 = vld [vmem:[%s1 + $0x20] sm:$0xff]
  %v81 = vld [vmem:[%s1 + $0x28] sm:$0xff]
  %v82 = vld [vmem:[%s1 + $0x30] sm:$0xff]
  %v83 = vld [vmem:[%s1 + $0x38] sm:$0xff]
  %v84 = vld [vmem:[%s1 + $0x40] sm:$0xff]
  %v85 = vld [vmem:[%s1 + $0x48] sm:$0xff]
  %v86 = vld [vmem:[%s1 + $0x50] sm:$0xff]
  %v87 = vld [vmem:[%s1 + $0x58] sm:$0xff]
  %v88 = vld [vmem:[%s1 + $0x60] sm:$0xff]
  %v89 = vld [vmem:[%s1 + $0x68] sm:$0xff]
  %v90 = vld [vmem:[%s1 + $0x70] sm:$0xff]
  %v91 = vld [vmem:[%s1 + $0x78] sm:$0xff]
  %v92 = vld [vmem:[%s1 + $0x80] sm:$0xff]
  %v93 = vld [vmem:[%s1 + $0x88] sm:$0xff]
  %v94 = vld [vmem:[%s1 + $0x90] sm:$0xff]
  %v95 = vld [vmem:[%s1 + $0x98] sm:$0xff]
  %v96 = vld [vmem:[%s1 + $0xa0] sm:$0xff]
  %v97 = vld [vmem:[%s1 + $0xa8] sm:$0xff]
  %v98 = vld [vmem:[%s1 + $0xb0] sm:$0xff]
  %v99 = vld [vmem:[%s1 + $0xb8] sm:$0xff]
  %v100 = vld [vmem:[%s1 + $0xc0] sm:$0xff]
  %v101 = vld [vmem:[%s1 + $0xc8] sm:$0xff]
  %v102 = vld [vmem:[%s1 + $0xd0] sm:$0xff]
  %v103 = vld [vmem:[%s1 + $0xd8] sm:$0xff]
  %v104 = vld [vmem:[%s1 + $0xe0] sm:$0xff]
  %v105 = vld [vmem:[%s1 + $0xe8] sm:$0xff]
  %v106 = vld [vmem:[%s1 + $0xf0] sm:$0xff]
  %v107 = vld [vmem:[%s1 + $0xf8] sm:$0xff]
  %v108 = vld [vmem:[%s1 + $0x100] sm:$0xff]
  %v109 = vld [vmem:[%s1 + $0x108] sm:$0xff]
  %v110 = vld [vmem:[%s1 + $0x110] sm:$0xff]
  %v111 = vld [vmem:[%s1 + $0x118] sm:$0xff]
  %v112 = vld [vmem:[%s1 + $0x120] sm:$0xff]
  %v113 = vld [vmem:[%s1 + $0x128] sm:$0xff]
  %v114 = vld [vmem:[%s1 + $0x130] sm:$0xff]
  %v115 = vld [vmem:[%s1 + $0x138] sm:$0xff]
  %v116 = vld [vmem:[%s1 + $0x140] sm:$0xff]
  %v117 = vld [vmem:[%s1 + $0x148] sm:$0xff]
  %v118 = vld [vmem:[%s1 + $0x150] sm:$0xff]
  %v119 = vld [vmem:[%s1 + $0x158] sm:$0xff]
  %v120 = vld [vmem:[%s1 + $0x160] sm:$0xff]
  %v121 = vld [vmem:[%s1 + $0x168] sm:$0xff]
  %v122 = vld [vmem:[%s1 + $0x170] sm:$0xff]
  %v123 = vld [vmem:[%s1 + $0x178] sm:$0xff]
  %124 = vmatpush.msra.mxu0 %v91
  %125 = vmatpush.msra.mxu0 %v90
  %126 = vmatpush.msra.mxu0 %v89
  %127 = vmatpush.msra.mxu0 %v88
  %128 = vmatpush.msra.mxu0 %v87
  %129 = vmatpush.msra.mxu0 %v86
  %130 = vmatpush.msra.mxu0 %v85
  %131 = vmatpush.msra.mxu0 %v84
  %132 = vmatpush.msra.mxu0 %v83
  %133 = vmatpush.msra.mxu0 %v82
  %134 = vmatpush.msra.mxu0 %v81
  %135 = vmatpush.msra.mxu0 %v80
  %136 = vmatpush.msra.mxu0 %v79
  %137 = vmatpush.msra.mxu0 %v78
  %138 = vmatpush.msra.mxu0 %v77
  %139 = vmatpush.msra.mxu0 %v76
  %140 = vmatmul.f32.gmra.mxu0 %v61
  %v141 = vpop.f32.mrf.mxu0
  %v142 = vadd.f32 0.0, %v141
  %143 = vmatmul.f32.gmra.mxu0 %v62
  %v144 = vpop.f32.mrf.mxu0
  %v145 = vadd.f32 0.0, %v144
  %146 = vdwg.mxu0
  %147 = vmatpush.msra.mxu0 %v107
  %148 = vmatpush.msra.mxu0 %v106
  %149 = vmatpush.msra.mxu0 %v105
  %150 = vmatpush.msra.mxu0 %v104
  %151 = vmatpush.msra.mxu0 %v103
  %152 = vmatpush.msra.mxu0 %v102
  %153 = vmatpush.msra.mxu0 %v101
  %154 = vmatpush.msra.mxu0 %v100
  %155 = vmatpush.msra.mxu0 %v99
  %156 = vmatpush.msra.mxu0 %v98
  %157 = vmatpush.msra.mxu0 %v97
  %158 = vmatpush.msra.mxu0 %v96
  %159 = vmatpush.msra.mxu0 %v95
  %160 = vmatpush.msra.mxu0 %v94
  %161 = vmatpush.msra.mxu0 %v93
  %162 = vmatpush.msra.mxu0 %v92
  %163 = vmatmul.f32.gmra.mxu0 %v29
  %v164 = vpop.f32.mrf.mxu0
  %v165 = vadd.f32 %v142, %v164
  %166 = vmatmul.f32.gmra.mxu0 %v30
  %v167 = vpop.f32.mrf.mxu0
  %v168 = vadd.f32 %v145, %v167
  %169 = vdwg.mxu0
  %170 = vmatpush.msra.mxu0 %v123
  %171 = vmatpush.msra.mxu0 %v122
  %172 = vmatpush.msra.mxu0 %v121
  %173 = vmatpush.msra.mxu0 %v120
  %174 = vmatpush.msra.mxu0 %v119
  %175 = vmatpush.msra.mxu0 %v118
  %176 = vmatpush.msra.mxu0 %v117
  %177 = vmatpush.msra.mxu0 %v116
  %178 = vmatpush.msra.mxu0 %v115
  %179 = vmatpush.msra.mxu0 %v114
  %180 = vmatpush.msra.mxu0 %v113
  %181 = vmatpush.msra.mxu0 %v112
  %182 = vmatpush.msra.mxu0 %v111
  %183 = vmatpush.msra.mxu0 %v110
  %184 = vmatpush.msra.mxu0 %v109
  %185 = vmatpush.msra.mxu0 %v108
  %186 = vmatmul.f32.gmra.mxu0 %v74
  %v187 = vpop.f32.mrf.mxu0
  %v188 = vadd.f32 %v165, %v187
  %189 = vmatmul.f32.gmra.mxu0 %v75
  %v190 = vpop.f32.mrf.mxu0
  %v191 = vadd.f32 %v168, %v190
  %192 = vdwg.mxu0
  %v193 = vld [vmem:[%s4] sm:$0x1]
  %v194 = vld [vmem:[%s5] sm:$0x1]
  %v195 = vadd.f32 %v188, %v191
  %v196 = vrot.slane %v195, 4
  %v197 = vadd.f32 %v195, %v196
  %v198 = vrot.slane %v197, 2
  %v199 = vadd.f32 %v197, %v198
  %v200 = vrot.slane %v199, 1
  %v201 = vadd.f32 %v199, %v200
  %202 = vmatpush.msra.mxu0 %v46
  %203 = vmatpush.msra.mxu0 %v45
  %204 = vmatpush.msra.mxu0 %v44
  %205 = vmatpush.msra.mxu0 %v43
  %206 = vmatpush.msra.mxu0 %v42
  %207 = vmatpush.msra.mxu0 %v41
  %208 = vmatpush.msra.mxu0 %v40
  %209 = vmatpush.msra.mxu0 %v39
  %210 = vmatpush.msra.mxu0 %v38
  %211 = vmatpush.msra.mxu0 %v37
  %212 = vmatpush.msra.mxu0 %v36
  %213 = vmatpush.msra.mxu0 %v35
  %214 = vmatpush.msra.mxu0 %v34
  %215 = vmatpush.msra.mxu0 %v33
  %216 = vmatpush.msra.mxu0 %v32
  %217 = vmatpush.msra.mxu0 %v31
  %218 = vmatmul.f32.gmra.mxu0 %v201
  %v219 = vpop.f32.mrf.mxu0
  %v220 = vadd.f32 0.0, %v219
  %221 = vdwg.mxu0
  %v222 = vperm.slane %v220, 0
  %v223 = vsub.f32 %v188, %v222
  %v224 = vsub.f32 %v191, %v222
  %v225 = vmul.f32 %v223, %v223
  %v226 = vmul.f32 %v224, %v224
  %v227 = vadd.f32 %v225, %v226
  %v228 = vrot.slane %v227, 4
  %v229 = vadd.f32 %v227, %v228
  %v230 = vrot.slane %v229, 2
  %v231 = vadd.f32 %v229, %v230
  %v232 = vrot.slane %v231, 1
  %v233 = vadd.f32 %v231, %v232
  %234 = vmatpush.msra.mxu0 %v46
  %235 = vmatpush.msra.mxu0 %v45
  %236 = vmatpush.msra.mxu0 %v44
  %237 = vmatpush.msra.mxu0 %v43
  %238 = vmatpush.msra.mxu0 %v42
  %239 = vmatpush.msra.mxu0 %v41
  %240 = vmatpush.msra.mxu0 %v40
  %241 = vmatpush.msra.mxu0 %v39
  %242 = vmatpush.msra.mxu0 %v38
  %243 = vmatpush.msra.mxu0 %v37
  %244 = vmatpush.msra.mxu0 %v36
  %245 = vmatpush.msra.mxu0 %v35
  %246 = vmatpush.msra.mxu0 %v34
  %247 = vmatpush.msra.mxu0 %v33
  %248 = vmatpush.msra.mxu0 %v32
  %249 = vmatpush.msra.mxu0 %v31
  %250 = vmatmul.f32.gmra.mxu0 %v233
  %v251 = vpop.f32.mrf.mxu0
  %v252 = vadd.f32 1e-05, %v251
  %253 = vdwg.mxu0
  %v254 = vrsqrt.pop %v252
  %v255 = vmul.f32 %v254, %v252
  %v256 = vmul.f32 %v255, %v254
  %v257 = vmul.f32 0.5, %v256
  %v258 = vsub.f32 1.5, %v257
  %v259 = vmul.f32 %v254, %v258
  %vm260 = vweird.f32 %v252
  %vm261 = vweird.f32 %v254
  %vm262 = vmor %vm260, %vm261
  %v263 = vsel %vm262, %v254, %v259
  %v264 = vmul.f32 %v193, %v263
  %v266 = vperm.slane %v264, 0
  %v268 = vmul.f32 %v223, %v266
  %v269 = vmul.f32 %v224, %v266
  %v271 = vperm.slane %v194, 0
  %v273 = vadd.f32 %v268, %v271
  %v274 = vadd.f32 %v269, %v271
  %v275 = vmax.f32 %v273, 0.0
  %v276 = vmax.f32 %v274, 0.0
  %v277 = vrot.slane %v275, 7
  %v278 = vrot.slane %v276, 7
  %v279 = vsel %vm54, %v277, %v278
  %v280 = vsel %vm54, %v278, %v277
  %v281 = vsel %vm59, 0.0, %v280
  %v282 = vsel %vm60, 0.0, %v279
  %v283 = vrot.slane %v275, 1
  %v284 = vrot.slane %v276, 1
  %v285 = vsel %vm67, %v283, %v284
  %v286 = vsel %vm67, %v284, %v283
  %v287 = vsel %vm72, 0.0, %v285
  %v288 = vsel %vm73, 0.0, %v286
  %v289 = vld [vmem:[%s2] sm:$0xff]
  %v290 = vld [vmem:[%s2 + $0x8] sm:$0xff]
  %v291 = vld [vmem:[%s2 + $0x10] sm:$0xff]
  %v292 = vld [vmem:[%s2 + $0x18] sm:$0xff]
  %v293 = vld [vmem:[%s2 + $0x20] sm:$0xff]
  %v294 = vld [vmem:[%s2 + $0x28] sm:$0xff]
  %v295 = vld [vmem:[%s2 + $0x30] sm:$0xff]
  %v296 = vld [vmem:[%s2 + $0x38] sm:$0xff]
  %v297 = vld [vmem:[%s2 + $0x40] sm:$0xff]
  %v298 = vld [vmem:[%s2 + $0x48] sm:$0xff]
  %v299 = vld [vmem:[%s2 + $0x50] sm:$0xff]
  %v300 = vld [vmem:[%s2 + $0x58] sm:$0xff]
  %v301 = vld [vmem:[%s2 + $0x60] sm:$0xff]
  %v302 = vld [vmem:[%s2 + $0x68] sm:$0xff]
  %v303 = vld [vmem:[%s2 + $0x70] sm:$0xff]
  %v304 = vld [vmem:[%s2 + $0x78] sm:$0xff]
  %v305 = vld [vmem:[%s2 + $0x80] sm:$0xff]
  %v306 = vld [vmem:[%s2 + $0x88] sm:$0xff]
  %v307 = vld [vmem:[%s2 + $0x90] sm:$0xff]
  %v308 = vld [vmem:[%s2 + $0x98] sm:$0xff]
  %v309 = vld [vmem:[%s2 + $0xa0] sm:$0xff]
  %v310 = vld [vmem:[%s2 + $0xa8] sm:$0xff]
  %v311 = vld [vmem:[%s2 + $0xb0] sm:$0xff]
  %v312 = vld [vmem:[%s2 + $0xb8] sm:$0xff]
  %v313 = vld [vmem:[%s2 + $0xc0] sm:$0xff]
  %v314 = vld [vmem:[%s2 + $0xc8] sm:$0xff]
  %v315 = vld [vmem:[%s2 + $0xd0] sm:$0xff]
  %v316 = vld [vmem:[%s2 + $0xd8] sm:$0xff]
  %v317 = vld [vmem:[%s2 + $0xe0] sm:$0xff]
  %v318 = vld [vmem:[%s2 + $0xe8] sm:$0xff]
  %v319 = vld [vmem:[%s2 + $0xf0] sm:$0xff]
  %v320 = vld [vmem:[%s2 + $0xf8] sm:$0xff]
  %v321 = vld [vmem:[%s2 + $0x100] sm:$0xff]
  %v322 = vld [vmem:[%s2 + $0x108] sm:$0xff]
  %v323 = vld [vmem:[%s2 + $0x110] sm:$0xff]
  %v324 = vld [vmem:[%s2 + $0x118] sm:$0xff]
  %v325 = vld [vmem:[%s2 + $0x120] sm:$0xff]
  %v326 = vld [vmem:[%s2 + $0x128] sm:$0xff]
  %v327 = vld [vmem:[%s2 + $0x130] sm:$0xff]
  %v328 = vld [vmem:[%s2 + $0x138] sm:$0xff]
  %v329 = vld [vmem:[%s2 + $0x140] sm:$0xff]
  %v330 = vld [vmem:[%s2 + $0x148] sm:$0xff]
  %v331 = vld [vmem:[%s2 + $0x150] sm:$0xff]
  %v332 = vld [vmem:[%s2 + $0x158] sm:$0xff]
  %v333 = vld [vmem:[%s2 + $0x160] sm:$0xff]
  %v334 = vld [vmem:[%s2 + $0x168] sm:$0xff]
  %v335 = vld [vmem:[%s2 + $0x170] sm:$0xff]
  %v336 = vld [vmem:[%s2 + $0x178] sm:$0xff]
  %337 = vmatpush.msra.mxu0 %v304
  %338 = vmatpush.msra.mxu0 %v303
  %339 = vmatpush.msra.mxu0 %v302
  %340 = vmatpush.msra.mxu0 %v301
  %341 = vmatpush.msra.mxu0 %v300
  %342 = vmatpush.msra.mxu0 %v299
  %343 = vmatpush.msra.mxu0 %v298
  %344 = vmatpush.msra.mxu0 %v297
  %345 = vmatpush.msra.mxu0 %v296
  %346 = vmatpush.msra.mxu0 %v295
  %347 = vmatpush.msra.mxu0 %v294
  %348 = vmatpush.msra.mxu0 %v293
  %349 = vmatpush.msra.mxu0 %v292
  %350 = vmatpush.msra.mxu0 %v291
  %351 = vmatpush.msra.mxu0 %v290
  %352 = vmatpush.msra.mxu0 %v289
  %353 = vmatmul.f32.gmra.mxu0 %v281
  %v354 = vpop.f32.mrf.mxu0
  %v355 = vadd.f32 0.0, %v354
  %356 = vmatmul.f32.gmra.mxu0 %v282
  %v357 = vpop.f32.mrf.mxu0
  %v358 = vadd.f32 0.0, %v357
  %359 = vdwg.mxu0
  %360 = vmatpush.msra.mxu0 %v320
  %361 = vmatpush.msra.mxu0 %v319
  %362 = vmatpush.msra.mxu0 %v318
  %363 = vmatpush.msra.mxu0 %v317
  %364 = vmatpush.msra.mxu0 %v316
  %365 = vmatpush.msra.mxu0 %v315
  %366 = vmatpush.msra.mxu0 %v314
  %367 = vmatpush.msra.mxu0 %v313
  %368 = vmatpush.msra.mxu0 %v312
  %369 = vmatpush.msra.mxu0 %v311
  %370 = vmatpush.msra.mxu0 %v310
  %371 = vmatpush.msra.mxu0 %v309
  %372 = vmatpush.msra.mxu0 %v308
  %373 = vmatpush.msra.mxu0 %v307
  %374 = vmatpush.msra.mxu0 %v306
  %375 = vmatpush.msra.mxu0 %v305
  %376 = vmatmul.f32.gmra.mxu0 %v275
  %v377 = vpop.f32.mrf.mxu0
  %v378 = vadd.f32 %v355, %v377
  %379 = vmatmul.f32.gmra.mxu0 %v276
  %v380 = vpop.f32.mrf.mxu0
  %v381 = vadd.f32 %v358, %v380
  %382 = vdwg.mxu0
  %383 = vmatpush.msra.mxu0 %v336
  %384 = vmatpush.msra.mxu0 %v335
  %385 = vmatpush.msra.mxu0 %v334
  %386 = vmatpush.msra.mxu0 %v333
  %387 = vmatpush.msra.mxu0 %v332
  %388 = vmatpush.msra.mxu0 %v331
  %389 = vmatpush.msra.mxu0 %v330
  %390 = vmatpush.msra.mxu0 %v329
  %391 = vmatpush.msra.mxu0 %v328
  %392 = vmatpush.msra.mxu0 %v327
  %393 = vmatpush.msra.mxu0 %v326
  %394 = vmatpush.msra.mxu0 %v325
  %395 = vmatpush.msra.mxu0 %v324
  %396 = vmatpush.msra.mxu0 %v323
  %397 = vmatpush.msra.mxu0 %v322
  %398 = vmatpush.msra.mxu0 %v321
  %399 = vmatmul.f32.gmra.mxu0 %v287
  %v400 = vpop.f32.mrf.mxu0
  %v401 = vadd.f32 %v378, %v400
  %402 = vmatmul.f32.gmra.mxu0 %v288
  %v403 = vpop.f32.mrf.mxu0
  %v404 = vadd.f32 %v381, %v403
  %405 = vdwg.mxu0
  %v406 = vld [vmem:[%s6] sm:$0x1]
  %v407 = vld [vmem:[%s7] sm:$0x1]
  %v408 = vadd.f32 %v401, %v404
  %v409 = vrot.slane %v408, 4
  %v410 = vadd.f32 %v408, %v409
  %v411 = vrot.slane %v410, 2
  %v412 = vadd.f32 %v410, %v411
  %v413 = vrot.slane %v412, 1
  %v414 = vadd.f32 %v412, %v413
  %415 = vmatpush.msra.mxu0 %v46
  %416 = vmatpush.msra.mxu0 %v45
  %417 = vmatpush.msra.mxu0 %v44
  %418 = vmatpush.msra.mxu0 %v43
  %419 = vmatpush.msra.mxu0 %v42
  %420 = vmatpush.msra.mxu0 %v41
  %421 = vmatpush.msra.mxu0 %v40
  %422 = vmatpush.msra.mxu0 %v39
  %423 = vmatpush.msra.mxu0 %v38
  %424 = vmatpush.msra.mxu0 %v37
  %425 = vmatpush.msra.mxu0 %v36
  %426 = vmatpush.msra.mxu0 %v35
  %427 = vmatpush.msra.mxu0 %v34
  %428 = vmatpush.msra.mxu0 %v33
  %429 = vmatpush.msra.mxu0 %v32
  %430 = vmatpush.msra.mxu0 %v31
  %431 = vmatmul.f32.gmra.mxu0 %v414
  %v432 = vpop.f32.mrf.mxu0
  %v433 = vadd.f32 0.0, %v432
  %434 = vdwg.mxu0
  %v435 = vperm.slane %v433, 0
  %v436 = vsub.f32 %v401, %v435
  %v437 = vsub.f32 %v404, %v435
  %v438 = vmul.f32 %v436, %v436
  %v439 = vmul.f32 %v437, %v437
  %v440 = vadd.f32 %v438, %v439
  %v441 = vrot.slane %v440, 4
  %v442 = vadd.f32 %v440, %v441
  %v443 = vrot.slane %v442, 2
  %v444 = vadd.f32 %v442, %v443
  %v445 = vrot.slane %v444, 1
  %v446 = vadd.f32 %v444, %v445
  %447 = vmatpush.msra.mxu0 %v46
  %448 = vmatpush.msra.mxu0 %v45
  %449 = vmatpush.msra.mxu0 %v44
  %450 = vmatpush.msra.mxu0 %v43
  %451 = vmatpush.msra.mxu0 %v42
  %452 = vmatpush.msra.mxu0 %v41
  %453 = vmatpush.msra.mxu0 %v40
  %454 = vmatpush.msra.mxu0 %v39
  %455 = vmatpush.msra.mxu0 %v38
  %456 = vmatpush.msra.mxu0 %v37
  %457 = vmatpush.msra.mxu0 %v36
  %458 = vmatpush.msra.mxu0 %v35
  %459 = vmatpush.msra.mxu0 %v34
  %460 = vmatpush.msra.mxu0 %v33
  %461 = vmatpush.msra.mxu0 %v32
  %462 = vmatpush.msra.mxu0 %v31
  %463 = vmatmul.f32.gmra.mxu0 %v446
  %v464 = vpop.f32.mrf.mxu0
  %v465 = vadd.f32 1e-05, %v464
  %466 = vdwg.mxu0
  %v467 = vrsqrt.pop %v465
  %v468 = vmul.f32 %v467, %v465
  %v469 = vmul.f32 %v468, %v467
  %v470 = vmul.f32 0.5, %v469
  %v471 = vsub.f32 1.5, %v470
  %v472 = vmul.f32 %v467, %v471
  %vm473 = vweird.f32 %v465
  %vm474 = vweird.f32 %v467
  %vm475 = vmor %vm473, %vm474
  %v476 = vsel %vm475, %v467, %v472
  %v477 = vmul.f32 %v406, %v476
  %v479 = vperm.slane %v477, 0
  %v481 = vmul.f32 %v436, %v479
  %v482 = vmul.f32 %v437, %v479
  %v484 = vperm.slane %v407, 0
  %v486 = vadd.f32 %v481, %v484
  %v487 = vadd.f32 %v482, %v484
  %v488 = vadd.f32 %v486, %v29
  %v489 = vadd.f32 %v487, %v30
  %v490 = vmax.f32 %v488, 0.0
  %v491 = vmax.f32 %v489, 0.0
  %492 = vst [vmem:[%s8] sm:$0xff] %v490
  %493 = vst [vmem:[%s8 + $0x8] sm:$0xff] %v491
  // Predicated region
  $region34: #{resnet_basicblock.1} parent=0 // pred_check
    _
  $region35: #{resnet_basicblock.1} parent=0 // pred_check_branch
    %495 = sbr.rel (0) target = $region37
  $region36: #{resnet_basicblock.1} parent=0 // pred_region
    _
  $region37: #{resnet_basicblock.1} parent=0 // pred_fallthru
    _
  // Predicated region
  $region38: #{resnet_basicblock.1} parent=0 // pred_check
    _
  $region39: #{resnet_basicblock.1} parent=0 // pred_check_branch
    %497 = sbr.rel (0) target = $region41
  $region40: #{resnet_basicblock.1} parent=0 // pred_region
    _
  $region41: #{resnet_basicblock.1} parent=0 // pred_fallthru
    _

</llo_original>
